<compile_context>
chip_gen: v5e
topology: v5e:2x2
jax: 0.10.0
libtpu: 0.0.40
codegen_flags: <defaults>
</compile_context>

<pallas_src>
import functools
import math

import jax
import jax.numpy as jnp
from jax import lax
from jax.experimental import pallas as pl
from jax.experimental.pallas import tpu as pltpu

LANE = 128


def _round_up(x, m):
    return ((x + m - 1) // m) * m


def _pad2d(x, rows, cols):
    r, c = x.shape
    if r == rows and c == cols:
        return x
    return jnp.pad(x, ((0, rows - r), (0, cols - c)))


# ------------------------------ kernels -------------------------------------

def _linear_kernel(x_ref, w_ref, b_ref, o_ref):
    # embedding_h:  y = x @ W^T + b   (W^T passed in as w_ref)
    o_ref[...] = (jnp.dot(x_ref[...], w_ref[...],
                          preferred_element_type=jnp.float32) + b_ref[...])


def _sage_layer_kernel(residual, tk,
                       a_ref, invdeg_ref, hrow_ref, hagg_ref,
                       wh_ref, wc_ref, b_ref, gs_ref, beta_ref,
                       o_ref, c_acc):
    k = pl.program_id(1)

    @pl.when(k == 0)
    def _():
        c_acc[...] = jnp.zeros_like(c_acc)

    # Aggregation partial sum for this K tile.  A is streamed from HBM as
    # int8 (0/1 -> exact) and widened to bf16 right before the MXU; the
    # aggregation operand of h is a resident bf16 copy sliced per K tile.
    # bf16 x bf16 MXU with f32 accumulation — no f32 upcast of A.
    col0 = pl.multiple_of(k * tk, tk)
    a = a_ref[...].astype(jnp.bfloat16)                       # (tm, tk)
    h_k = hagg_ref[pl.ds(col0, tk), :]                        # (tk, Din) bf16
    c_acc[...] += jnp.dot(a, h_k, preferred_element_type=jnp.float32)

    @pl.when(k == pl.num_programs(1) - 1)
    def _():
        h = hrow_ref[...]                                     # (tm, Din) f32
        c = c_acc[...] * invdeg_ref[...]                      # mean aggregation
        # NodeApply as two accumulating dots (no lane-axis concat copy).
        z = (jnp.dot(h, wh_ref[...], preferred_element_type=jnp.float32)
             + jnp.dot(c, wc_ref[...], preferred_element_type=jnp.float32)
             + b_ref[...])
        # F.normalize(p=2, dim=1, eps=1e-12) via rsqrt (EUP slot).
        nrm2 = jnp.sum(z * z, axis=-1, keepdims=True)
        z = z * lax.rsqrt(jnp.maximum(nrm2, 1e-24))
        # ReLU, then BatchNorm1d (inference; gamma/sqrt(var+eps) prefolded).
        z = jnp.maximum(z, 0.0)
        z = z * gs_ref[...] + beta_ref[...]
        if residual:                                          # static flag
            z = h + z
        o_ref[...] = z


# ------------------------------ wrappers ------------------------------------

def linear(x, w_t, b, *, tm):
    n, d_in = x.shape
    d_out = w_t.shape[1]
    return pl.pallas_call(
        _linear_kernel,
        out_shape=jax.ShapeDtypeStruct((n, d_out), jnp.float32),
        grid=(n // tm,),
        in_specs=[pl.BlockSpec((tm, d_in), lambda i: (i, 0)),
                  pl.BlockSpec((d_in, d_out), lambda i: (0, 0)),
                  pl.BlockSpec((1, d_out), lambda i: (0, 0))],
        out_specs=pl.BlockSpec((tm, d_out), lambda i: (i, 0)),
        compiler_params=pltpu.CompilerParams(
            dimension_semantics=("parallel",)),
    )(x, w_t, b.reshape(1, d_out))


def sage_layer(a_i8, inv_deg, h_f32, h_bf16, wh, wc, b, gamma_scaled, beta,
               *, residual, tm, tk):
    n, d_in = h_f32.shape             # already lane/tile padded
    d_out = wh.shape[1]
    kern = functools.partial(_sage_layer_kernel, residual, tk)

    # Explicit VMEM budget: double-buffered streams + resident operands +
    # accumulator, with 2x headroom, clamped to 64 MiB so the same config
    # also fits within one v7x TensorCore (budget per TC, not per chip).
    est = (2 * tm * tk                      # int8 A tile (double buffered)
           + 2 * n * d_in * 2               # resident bf16 h (2 bufs default)
           + 2 * tm * d_in * 4              # f32 h row tile
           + 2 * 2 * d_in * d_out * 4       # W_h, W_c
           + tm * d_in * 4                  # c accumulator scratch
           + 2 * tm * d_out * 4             # output tile
           + 6 * d_out * 4 + 4 * tm * 4)    # b / gs / beta / inv_deg
    vmem_limit = int(min(64 * 2**20, max(16 * 2**20, 2 * est)))

    return pl.pallas_call(
        kern,
        out_shape=jax.ShapeDtypeStruct((n, d_out), jnp.float32),
        grid=(n // tm, n // tk),                              # reduction last
        in_specs=[
            pl.BlockSpec((tm, tk), lambda i, k: (i, k)),      # A int8, streamed
            pl.BlockSpec((tm, 1), lambda i, k: (i, 0)),       # 1/deg row tile
            pl.BlockSpec((tm, d_in), lambda i, k: (i, 0)),    # f32 h row tile
            pl.BlockSpec((n, d_in), lambda i, k: (0, 0)),     # resident bf16 h
            pl.BlockSpec((d_in, d_out), lambda i, k: (0, 0)),  # W_h
            pl.BlockSpec((d_in, d_out), lambda i, k: (0, 0)),  # W_c
            pl.BlockSpec((1, d_out), lambda i, k: (0, 0)),     # b
            pl.BlockSpec((1, d_out), lambda i, k: (0, 0)),     # gamma/std
            pl.BlockSpec((1, d_out), lambda i, k: (0, 0)),     # beta
        ],
        out_specs=pl.BlockSpec((tm, d_out), lambda i, k: (i, 0)),
        scratch_shapes=[pltpu.VMEM((tm, d_in), jnp.float32)],  # c accumulator
        compiler_params=pltpu.CompilerParams(
            dimension_semantics=("parallel", "arbitrary"),
            vmem_limit_bytes=vmem_limit),
        # TODO(synk): on v7x mark the grid-invariant operands (resident bf16 h,
        # W_h, W_c, b, gs, beta) with pipeline_mode=pl.Buffered(1) to avoid
        # double-buffering them inside the 64 MiB/TC budget.
    )(a_i8, inv_deg, h_f32, h_bf16, wh, wc,
      b.reshape(1, d_out), gamma_scaled.reshape(1, d_out),
      beta.reshape(1, d_out))


def graphsage_net_forward(params, a, h0, *, tm=256, tk=1024, bn_eps=1e-5):
    n, in_dim = h0.shape
    hidden = params["emb_w_t"].shape[1]
    out_dim = params["layers"][-1]["w_t"].shape[1]

    # Node axis padded so both the row tile (tm) and the K tile (tk) divide it.
    np_ = _round_up(n, math.lcm(tm, tk))
    pin0 = _round_up(in_dim, LANE)

    # Graph preprocessing once (A is constant across layers).  A lives in HBM
    # as int8 (0/1) — half the bf16 bytes on the dominant O(N^2) stream — and
    # is widened to bf16 per tile inside the kernel.
    a_pad = _pad2d(a, np_, np_)
    a_i8 = a_pad.astype(jnp.int8)
    inv_deg = (1.0 / jnp.maximum(a_pad.sum(-1, keepdims=True), 1.0)
               ).astype(jnp.float32)

    # embedding_h (in_feat_dropout = identity at inference).
    # NOTE: padded node rows of h are NOT zero after this (they equal the
    # bias).  That is harmless here — padded A columns are zero and padded
    # rows are sliced off — but never reduce over the node axis of h.
    ph = _round_up(hidden, LANE)
    x = _pad2d(h0.astype(jnp.float32), np_, pin0)
    w_emb = _pad2d(params["emb_w_t"], pin0, ph)
    b_emb = jnp.pad(params["emb_b"], (0, ph - hidden))
    h = linear(x, w_emb, b_emb, tm=tm)

    d_in, pd_in = hidden, ph
    inv_std = 1.0 / math.sqrt(1.0 + bn_eps)   # BN inference: mean=0, var=1
    for lp in params["layers"]:
        d_out = lp["w_t"].shape[1]
        pd_out = _round_up(d_out, LANE)
        wh = _pad2d(lp["w_t"][:d_in], pd_in, pd_out)   # self-feature weight
        wc = _pad2d(lp["w_t"][d_in:], pd_in, pd_out)   # neighbor-mean weight
        b = jnp.pad(lp["b"], (0, pd_out - d_out))
        gs = jnp.pad(lp["gamma"] * inv_std, (0, pd_out - d_out))
        beta = jnp.pad(lp["beta"], (0, pd_out - d_out))
        h_bf16 = h.astype(jnp.bfloat16)                # aggregation operand only
        h = sage_layer(a_i8, inv_deg, h, h_bf16, wh, wc, b, gs, beta,
                       residual=lp["residual"], tm=tm, tk=tk)
        d_in, pd_in = d_out, pd_out

    return h[:n, :out_dim]
    # TODO(synk): edge_predictor / MLPReadout / loss are separate methods, not
    # part of forward(g, h, e); not implemented here.
    # TODO(synk): for COLLAB-scale graphs (N ~ 2.35e5) replace the dense-A
    # matmul with a CSR gather path (PrefetchScalarGridSpec row offsets /
    # column indices + double-buffered make_async_copy of neighbor rows).


# ------------------------------ params & reference --------------------------

def init_params(key, in_dim, hidden_dim, out_dim, n_layers, residual=True):
    keys = jax.random.split(key, 2 + 2 * n_layers)
    params = {
        "emb_w_t": 0.1 * jax.random.normal(keys[0], (in_dim, hidden_dim),
                                           jnp.float32),
        "emb_b": 0.1 * jax.random.normal(keys[1], (hidden_dim,), jnp.float32),
        "layers": [],
    }
    dims = [hidden_dim] * (n_layers - 1) + [out_dim]
    d_in, ki = hidden_dim, 2
    for d_out in dims:
        params["layers"].append(dict(
            w_t=0.1 * jax.random.normal(keys[ki], (2 * d_in, d_out),
                                        jnp.float32),
            b=0.1 * jax.random.normal(keys[ki + 1], (d_out,), jnp.float32),
            gamma=jnp.ones((d_out,), jnp.float32),
            beta=jnp.zeros((d_out,), jnp.float32),
            residual=residual and (d_in == d_out)))
        d_in = d_out
        ki += 2
    return params


def _reference(params, a, h0, bn_eps=1e-5, agg_dtype=jnp.float32):
    """Pure-JAX reference.  agg_dtype=bfloat16 mirrors the kernel's bf16
    aggregation operand; float32 is the exact PyTorch-semantics reference."""
    h = h0 @ params["emb_w_t"] + params["emb_b"]
    deg = jnp.maximum(a.sum(-1, keepdims=True), 1.0)
    for lp in params["layers"]:
        h_agg = h.astype(agg_dtype).astype(jnp.float32)
        c = (a @ h_agg) / deg
        z = jnp.concatenate([h, c], axis=1) @ lp["w_t"] + lp["b"]
        z = z / jnp.maximum(jnp.linalg.norm(z, axis=1, keepdims=True), 1e-12)
        z = jax.nn.relu(z)
        z = z * (lp["gamma"] / jnp.sqrt(1.0 + bn_eps)) + lp["beta"]
        if lp["residual"]:
            z = h + z
        h = z
    return h


# ------------------------------ main -----------------------------------------

if __name__ == "__main__":
    jax.config.update("jax_default_matmul_precision", "highest")

    # Small shapes; N chosen so the row (tm) and K (tk) grids both have >1 tile
    # and exercise node-axis padding (Np = 384 with tm = tk = 128).
    N, in_dim, hidden_dim, out_dim, L = 300, 16, 32, 32, 3
    key = jax.random.PRNGKey(0)
    k_a, k_h, k_p = jax.random.split(key, 3)

    # dense directed adjacency (j -> i message direction) and raw node feats
    a = (jax.random.uniform(k_a, (N, N)) < 0.05).astype(jnp.float32)
    h0 = jax.random.normal(k_h, (N, in_dim), jnp.float32)
    params = init_params(k_p, in_dim, hidden_dim, out_dim, L, residual=True)

    out = jax.block_until_ready(
        graphsage_net_forward(params, a, h0, tm=128, tk=128))
    assert out.shape == (N, out_dim)

    # Tight check against a reference that matches the kernel's bf16
    # aggregation numerics; loose check against the pure-f32 PyTorch semantics.
    ref_match = _reference(params, a, h0, agg_dtype=jnp.bfloat16)
    ref_exact = _reference(params, a, h0, agg_dtype=jnp.float32)
    err_match = float(jnp.max(jnp.abs(out - ref_match)))
    err_exact = float(jnp.max(jnp.abs(out - ref_exact)))
    assert jnp.allclose(out, ref_match, atol=1e-3, rtol=1e-3), err_match
    assert jnp.allclose(out, ref_exact, atol=1e-2, rtol=1e-2), err_exact
    print("KERNEL_OK")
</pallas_src>

<mosaic_0001>
module attributes {stable_mosaic.version = 11 : i64} {
  func.func @_linear_kernel(%arg0: i32, %arg1: memref<128x128xf32, #tpu.memory_space<vmem>>, %arg2: memref<128x128xf32, #tpu.memory_space<vmem>>, %arg3: memref<1x128xf32, #tpu.memory_space<vmem>>, %arg4: memref<128x128xf32, #tpu.memory_space<vmem>>) attributes {dimension_semantics = [#tpu.dimension_semantics<parallel>], iteration_bounds = array<i64: 3>, scalar_prefetch = 0 : i64, scratch_operands = 0 : i64, tpu.core_type = #tpu.core_type<tc>, window_params = [{transform_indices = @transform_0, window_bounds = array<i64: 128, 128>}, {pipeline_mode = #tpu.pipeline_mode<synchronous>, transform_indices = @transform_1, window_bounds = array<i64: 128, 128>}, {pipeline_mode = #tpu.pipeline_mode<synchronous>, transform_indices = @transform_2, window_bounds = array<i64: 1, 128>}, {transform_indices = @transform_3, window_bounds = array<i64: 128, 128>}]} {
    %c0 = arith.constant 0 : index
    %c0_0 = arith.constant 0 : index
    %0 = vector.load %arg1[%c0, %c0_0] : memref<128x128xf32, #tpu.memory_space<vmem>>, vector<128x128xf32>
    %c0_1 = arith.constant 0 : index
    %c0_2 = arith.constant 0 : index
    %1 = vector.load %arg2[%c0_1, %c0_2] : memref<128x128xf32, #tpu.memory_space<vmem>>, vector<128x128xf32>
    %cst = arith.constant dense<0.000000e+00> : vector<128x128xf32>
    %2 = tpu.matmul %0, %1, %cst {dimension_numbers = #tpu.dot_dimension_numbers<[1], [0], [0], [1], [0, 0, 1, 1], [], []>, precision = #tpu.contract_precision<fp32>} : vector<128x128xf32>, vector<128x128xf32>, vector<128x128xf32> -> vector<128x128xf32>
    %c0_3 = arith.constant 0 : index
    %c0_4 = arith.constant 0 : index
    %3 = vector.load %arg3[%c0_3, %c0_4] : memref<1x128xf32, #tpu.memory_space<vmem>>, vector<1x128xf32>
    %4 = vector.broadcast %3 : vector<1x128xf32> to vector<128x128xf32>
    %5 = arith.addf %2, %4 : vector<128x128xf32>
    %c0_5 = arith.constant 0 : index
    %c0_6 = arith.constant 0 : index
    %6 = vector.load %arg4[%c0_5, %c0_6] : memref<128x128xf32, #tpu.memory_space<vmem>>, vector<128x128xf32>
    tpu.vector_store %arg4[%c0_5, %c0_6], %5 {strides = array<i32>} : memref<128x128xf32, #tpu.memory_space<vmem>>, vector<128x128xf32>,
    return
  }
  func.func @transform_0(%arg0: i32) -> (i32, i32) {
    %c0_i32 = arith.constant 0 : i32
    %c0_i32_0 = arith.constant 0 : i32
    return %arg0, %c0_i32 : i32, i32
  }
  func.func @transform_1(%arg0: i32) -> (i32, i32) {
    %c0_i32 = arith.constant 0 : i32
    %c0_i32_0 = arith.constant 0 : i32
    %c0_i32_1 = arith.constant 0 : i32
    return %c0_i32, %c0_i32_0 : i32, i32
  }
  func.func @transform_2(%arg0: i32) -> (i32, i32) {
    %c0_i32 = arith.constant 0 : i32
    %c0_i32_0 = arith.constant 0 : i32
    %c0_i32_1 = arith.constant 0 : i32
    return %c0_i32, %c0_i32_0 : i32, i32
  }
  func.func @transform_3(%arg0: i32) -> (i32, i32) {
    %c0_i32 = arith.constant 0 : i32
    %c0_i32_0 = arith.constant 0 : i32
    return %arg0, %c0_i32 : i32, i32
  }
}

</mosaic_0001>

<llo_original>
// kernel: tpu_custom_call.1
$region0: #{tpu_custom_call.1}
  #allocation0 [shape = 'u32[]', space=smem, size = 0x4, offset = 0x4, fixed_abs, tag = 'smem constant byte address 0x4 - core index']
  #allocation1 [shape = 'u32[72,128]{1,0:T(1,128)}', space=vmem, size = 0x9000, scoped, tag = 'internal scratch']
  %s0 = inlined_call_operand.hbm [shape: f32[384,128], index: 0, kind: input, shape index: {}]
  %s1 = inlined_call_operand.hbm [shape: f32[128,128], index: 1, kind: input, shape index: {}]
  %s2 = inlined_call_operand.vmem [shape: f32[1,128], index: 2, kind: input, shape index: {}]
  %s3 = inlined_call_operand.hbm [shape: f32[384,128], index: 3, kind: output, shape index: {}]
  %s4 = sld [smem:[#allocation0]]
  $region53: #{tpu_custom_call.1} parent=0
    _
  %s6 = ssub.s32 1, %s4
  %s7 = scalar_select 0, %s6, %s4
  $region1: #{tpu_custom_call.1} parent=0
    #allocation2 [shape = 'u8[131072]{0}', space=vmem, size = 0x20000, scoped, tag = 'input window, operand 0']
    #allocation3 [shape = 's32[2]{0}', space=sflag, size = 0x8, scoped, tag = 'scoped memory for tpu_custom_call.1']
    #allocation4 [shape = 's32[2]{0}', space=sflag, size = 0x8, scoped, tag = 'scoped memory for tpu_custom_call.1']
    #allocation5 [shape = 'u8[65536]{0}', space=vmem, size = 0x10000, scoped, tag = 'input window, operand 1, single buffered']
    #allocation6 [shape = 's32[1]{0}', space=sflag, size = 0x4, scoped, tag = 'scoped memory for tpu_custom_call.1']
    #allocation7 [shape = 'u8[131072]{0}', space=vmem, size = 0x20000, scoped, tag = 'output window, operand 0']
    %8 = vsyncpa [#allocation3], 0
    %s9 = scalar_lea.sflag [#allocation3], 1
    %10 = vsyncpa %s9, 0
    %11 = vsyncpa [#allocation6], 0
    %12 = vsyncpa [#allocation4], 0
    %s13 = scalar_lea.sflag [#allocation4], 1
    %14 = vsyncpa %s13, 0
    loop: start=0, step=1, limit=5
    $region2: #{tpu_custom_call.1} parent=1 // loop_pre_header
      _
    $region3: #{tpu_custom_call.1} parent=1 // loop_header
      %s16 = sphi 0, %s20
      %p17 = scmp.ge.s32.totalorder %s16, 5
      %s26 = sphi 0, %s28
      %s29 = sphi 0, %s26
      %s30 = sphi 0, %s29
      %s46 = sphi 0, %s30
      %s50 = sphi 0, %s50
      %s52 = sphi 0, %s50
      %s53 = sphi 0, %s52
      %s67 = sphi 0, %s53
      %s71 = sphi 0, %s71
      %s73 = sphi 0, %s71
      %s74 = sphi 0, %s73
      %s88 = sphi 0, %s74
      %s94 = sphi 0, %s96
      %s97 = sphi 0, %s94
      %s98 = sphi 0, %s97
      %s114 = sphi 0, %s98
    $region4: #{tpu_custom_call.1} parent=1 // loop_header_branch
      %19 = sbr.rel (%p17) target = $region8
    $region5: #{tpu_custom_call.1} parent=1 // loop_body
      %s21 = ssub.s32 %s16, 1
      %s22 = ssub.s32 %s16, 2
      %s23 = sadd.s32 %s16, 1
      %s24 = ssub.s32 %s16, %s23
      %p25 = scmp.eq.s32.totalorder %s24, 0
      %s27 = sadd.s32 %s26, 1
      %s28 = scalar_select %p25, %s26, %s27
      %p31 = pneg %p25
      %p32 = scmp.eq.s32.totalorder %s16, 2
      %p33 = por %p31, %p32
      %p34 = scmp.ne.s32.totalorder %s26, %s29
      %p35 = scmp.eq.s32.totalorder %s16, 0
      %p36 = por %p34, %p35
      %p37 = scmp.ne.s32.totalorder %s26, %s29
      %p38 = scmp.eq.s32.totalorder %s21, 2
      %p39 = por %p37, %p38
      %p40 = scmp.ne.s32.totalorder %s29, %s30
      %p41 = scmp.eq.s32.totalorder %s21, 0
      %p42 = por %p40, %p41
      %p43 = scmp.ne.s32.totalorder %s29, %s30
      %p44 = scmp.eq.s32.totalorder %s22, 2
      %p45 = por %p43, %p44
      %p47 = scmp.ne.s32.totalorder %s30, %s46
      %p48 = scmp.eq.s32.totalorder %s22, 0
      %p49 = por %p47, %p48
      %s51 = sadd.s32 %s50, 1
      %p54 = scmp.eq.s32.totalorder %s16, 2
      %p55 = scmp.ne.s32.totalorder %s50, %s52
      %p56 = scmp.eq.s32.totalorder %s16, 0
      %p57 = por %p55, %p56
      %p58 = scmp.ne.s32.totalorder %s50, %s52
      %p59 = scmp.eq.s32.totalorder %s21, 2
      %p60 = por %p58, %p59
      %p61 = scmp.ne.s32.totalorder %s52, %s53
      %p62 = scmp.eq.s32.totalorder %s21, 0
      %p63 = por %p61, %p62
      %p64 = scmp.ne.s32.totalorder %s52, %s53
      %p65 = scmp.eq.s32.totalorder %s22, 2
      %p66 = por %p64, %p65
      %p68 = scmp.ne.s32.totalorder %s53, %s67
      %p69 = scmp.eq.s32.totalorder %s22, 0
      %p70 = por %p68, %p69
      %s72 = sadd.s32 %s71, 1
      %p75 = scmp.eq.s32.totalorder %s16, 2
      %p76 = scmp.ne.s32.totalorder %s71, %s73
      %p77 = scmp.eq.s32.totalorder %s16, 0
      %p78 = por %p76, %p77
      %p79 = scmp.ne.s32.totalorder %s71, %s73
      %p80 = scmp.eq.s32.totalorder %s21, 2
      %p81 = por %p79, %p80
      %p82 = scmp.ne.s32.totalorder %s73, %s74
      %p83 = scmp.eq.s32.totalorder %s21, 0
      %p84 = por %p82, %p83
      %p85 = scmp.ne.s32.totalorder %s73, %s74
      %p86 = scmp.eq.s32.totalorder %s22, 2
      %p87 = por %p85, %p86
      %p89 = scmp.ne.s32.totalorder %s74, %s88
      %p90 = scmp.eq.s32.totalorder %s22, 0
      %p91 = por %p89, %p90
      %s92 = ssub.s32 %s16, %s23
      %p93 = scmp.eq.s32.totalorder %s92, 0
      %s95 = sadd.s32 %s94, 1
      %s96 = scalar_select %p93, %s94, %s95
      %p99 = pneg %p93
      %p100 = scmp.eq.s32.totalorder %s16, 2
      %p101 = por %p99, %p100
      %p102 = scmp.ne.s32.totalorder %s94, %s97
      %p103 = scmp.eq.s32.totalorder %s16, 0
      %p104 = por %p102, %p103
      %p105 = scmp.ne.s32.totalorder %s94, %s97
      %p106 = scmp.eq.s32.totalorder %s21, 2
      %p107 = por %p105, %p106
      %p108 = scmp.ne.s32.totalorder %s97, %s98
      %p109 = scmp.eq.s32.totalorder %s21, 0
      %p110 = por %p108, %p109
      %p111 = scmp.ne.s32.totalorder %s97, %s98
      %p112 = scmp.eq.s32.totalorder %s22, 2
      %p113 = por %p111, %p112
      %p115 = scmp.ne.s32.totalorder %s98, %s114
      %p116 = scmp.eq.s32.totalorder %s22, 0
      %p117 = por %p115, %p116
      %p118 = scmp.le.s32.totalorder 1, %s16
      %p119 = scmp.lt.s32.totalorder %s16, 4
      %p120 = pnand %p118, %p119
      %p121 = pneg %p120
      // Predicated region
      $region9: #{tpu_custom_call.1} parent=5 // pred_check
        _
      $region10: #{tpu_custom_call.1} parent=5 // pred_check_branch
        %123 = sbr.rel (%p120) target = $region12
      $region11: #{tpu_custom_call.1} parent=5 // pred_region
        %s124 = ssub.s32 %s16, 1
        // Predicated region
        $region13: #{tpu_custom_call.1} parent=11 // pred_check
          %p125 = pneg %p63
        $region14: #{tpu_custom_call.1} parent=11 // pred_check_branch
          %127 = sbr.rel (%p125) target = $region16
        $region15: #{tpu_custom_call.1} parent=11 // pred_region
          %129 = vsyncadd [#allocation6], 0
          %s130 = sshll.u32 %s1, 4
          %s131 = int_to_ptr.hbm [resolvable:$true] %s130
          %s132 = sshll.u32 [#allocation5], 4
          %s133 = int_to_ptr.vmem [resolvable:$true] %s132
          %138 = dma.hbm_to_vmem [thread:$0]  %s131, 2048, %s133, [#allocation6], 128, 128, 8
        $region16: #{tpu_custom_call.1} parent=11 // pred_fallthru
          _
        // Predicated region
        $region17: #{tpu_custom_call.1} parent=11 // pred_check
          %p139 = pneg %p84
        $region18: #{tpu_custom_call.1} parent=11 // pred_check_branch
          %141 = sbr.rel (%p139) target = $region20
        $region19: #{tpu_custom_call.1} parent=11 // pred_region
          _
        $region20: #{tpu_custom_call.1} parent=11 // pred_fallthru
          _
      $region12: #{tpu_custom_call.1} parent=5 // pred_fallthru
        _
      %p142 = scmp.lt.s32.totalorder %s16, 3
      // Predicated region
      $region21: #{tpu_custom_call.1} parent=5 // pred_check
        %p143 = pneg %p142
      $region22: #{tpu_custom_call.1} parent=5 // pred_check_branch
        %145 = sbr.rel (%p143) target = $region24
      $region23: #{tpu_custom_call.1} parent=5 // pred_region
        // Predicated region
        $region25: #{tpu_custom_call.1} parent=23 // pred_check
          %p146 = pneg %p36
        $region26: #{tpu_custom_call.1} parent=23 // pred_check_branch
          %148 = sbr.rel (%p146) target = $region28
        $region27: #{tpu_custom_call.1} parent=23 // pred_region
          %s149 = sand.u32 %s26, 1
          %s150 = scalar_lea.sflag [#allocation3], %s149
          %s151 = sand.u32 %s26, 1
          %s152 = smul.addr %s151, 128
          %s153 = scalar_lea.vmem [#allocation2], %s152
          %s154 = smul.u32 16, %s16
          %156 = vsyncadd %s150, 0
          %s157 = smul.addr %s154, 8
          %s158 = scalar_lea.hbm %s0, %s157
          %s159 = sshll.u32 %s158, 4
          %s160 = int_to_ptr.hbm [resolvable:$true] %s159
          %s161 = sshll.u32 %s153, 4
          %s162 = int_to_ptr.vmem [resolvable:$true] %s161
          %167 = dma.hbm_to_vmem [thread:$0]  %s160, 2048, %s162, %s150, 128, 128, 8
        $region28: #{tpu_custom_call.1} parent=23 // pred_fallthru
          _
      $region24: #{tpu_custom_call.1} parent=5 // pred_fallthru
        _
      %p168 = scmp.le.s32.totalorder 1, %s16
      %p169 = scmp.lt.s32.totalorder %s16, 4
      %p170 = pnand %p168, %p169
      %p171 = pneg %p170
      // Predicated region
      $region29: #{tpu_custom_call.1} parent=5 // pred_check
        _
      $region30: #{tpu_custom_call.1} parent=5 // pred_check_branch
        %173 = sbr.rel (%p170) target = $region32
      $region31: #{tpu_custom_call.1} parent=5 // pred_region
        %s174 = ssub.s32 %s16, 1
        %s175 = sand.u32 %s29, 1
        %s176 = scalar_lea.sflag [#allocation3], %s175
        %s177 = sand.u32 %s29, 1
        %s178 = smul.addr %s177, 128
        %s179 = scalar_lea.vmem [#allocation2], %s178
        // Predicated region
        $region33: #{tpu_custom_call.1} parent=31 // pred_check
          %p180 = pneg %p42
        $region34: #{tpu_custom_call.1} parent=31 // pred_check_branch
          %182 = sbr.rel (%p180) target = $region36
        $region35: #{tpu_custom_call.1} parent=31 // pred_region
          %184 = dma.done %s176, 2048
        $region36: #{tpu_custom_call.1} parent=31 // pred_fallthru
          _
        // Predicated region
        $region37: #{tpu_custom_call.1} parent=31 // pred_check
          %p185 = pneg %p63
        $region38: #{tpu_custom_call.1} parent=31 // pred_check_branch
          %187 = sbr.rel (%p185) target = $region40
        $region39: #{tpu_custom_call.1} parent=31 // pred_region
          %189 = dma.done [#allocation6], 2048
        $region40: #{tpu_custom_call.1} parent=31 // pred_fallthru
          _
        %s190 = sand.u32 %s29, 1
        %s191 = scalar_lea.sflag [#allocation3], %s190
        %s192 = sand.u32 %s29, 1
        %s193 = smul.addr %s192, 128
        %s194 = scalar_lea.vmem [#allocation2], %s193
        %p195 = pneg %p42
        %p196 = pneg %p39
        %p197 = pneg %p63
        %p198 = pneg %p60
        %p199 = pneg %p84
        %p200 = pneg %p81
        %p201 = pneg %p110
        %p202 = pneg %p107
        %s203 = sand.u32 %s97, 1
        %s204 = scalar_lea.sflag [#allocation4], %s203
        %s205 = sand.u32 %s97, 1
        %s206 = smul.addr %s205, 128
        %s207 = scalar_lea.vmem [#allocation7], %s206
        %s208 = smul.u32 16, %s21
        %s209 = smul.u32 16, %s21
        %v210 = vld [vmem:[%s179] sm:$0xff]
        %v211 = vld [vmem:[%s179 + $0x8] sm:$0xff]
        %v212 = vld [vmem:[%s179 + $0x10] sm:$0xff]
        %v213 = vld [vmem:[%s179 + $0x18] sm:$0xff]
        %v214 = vld [vmem:[%s179 + $0x20] sm:$0xff]
        %v215 = vld [vmem:[%s179 + $0x28] sm:$0xff]
        %v216 = vld [vmem:[%s179 + $0x30] sm:$0xff]
        %v217 = vld [vmem:[%s179 + $0x38] sm:$0xff]
        %v218 = vld [vmem:[%s179 + $0x40] sm:$0xff]
        %v219 = vld [vmem:[%s179 + $0x48] sm:$0xff]
        %v220 = vld [vmem:[%s179 + $0x50] sm:$0xff]
        %v221 = vld [vmem:[%s179 + $0x58] sm:$0xff]
        %v222 = vld [vmem:[%s179 + $0x60] sm:$0xff]
        %v223 = vld [vmem:[%s179 + $0x68] sm:$0xff]
        %v224 = vld [vmem:[%s179 + $0x70] sm:$0xff]
        %v225 = vld [vmem:[%s179 + $0x78] sm:$0xff]
        %v226 = vld [vmem:[#allocation5] sm:$0xff]
        %v227 = vld [vmem:[#allocation5 + $0x8] sm:$0xff]
        %v228 = vld [vmem:[#allocation5 + $0x10] sm:$0xff]
        %v229 = vld [vmem:[#allocation5 + $0x18] sm:$0xff]
        %v230 = vld [vmem:[#allocation5 + $0x20] sm:$0xff]
        %v231 = vld [vmem:[#allocation5 + $0x28] sm:$0xff]
        %v232 = vld [vmem:[#allocation5 + $0x30] sm:$0xff]
        %v233 = vld [vmem:[#allocation5 + $0x38] sm:$0xff]
        %v234 = vld [vmem:[#allocation5 + $0x40] sm:$0xff]
        %v235 = vld [vmem:[#allocation5 + $0x48] sm:$0xff]
        %v236 = vld [vmem:[#allocation5 + $0x50] sm:$0xff]
        %v237 = vld [vmem:[#allocation5 + $0x58] sm:$0xff]
        %v238 = vld [vmem:[#allocation5 + $0x60] sm:$0xff]
        %v239 = vld [vmem:[#allocation5 + $0x68] sm:$0xff]
        %v240 = vld [vmem:[#allocation5 + $0x70] sm:$0xff]
        %v241 = vld [vmem:[#allocation5 + $0x78] sm:$0xff]
        %v242 = vld [vmem:[%s2] sm:$0x1]
        %v244 = vperm.slane %v242, 0
        %v246 = vand.u32 %v241, 4294901760
        %247 = vmatpush.msra.mxu0 %v246
        %v248 = vand.u32 %v240, 4294901760
        %249 = vmatpush.msra.mxu0 %v248
        %v250 = vand.u32 %v239, 4294901760
        %251 = vmatpush.msra.mxu0 %v250
        %v252 = vand.u32 %v238, 4294901760
        %253 = vmatpush.msra.mxu0 %v252
        %v254 = vand.u32 %v237, 4294901760
        %255 = vmatpush.msra.mxu0 %v254
        %v256 = vand.u32 %v236, 4294901760
        %257 = vmatpush.msra.mxu0 %v256
        %v258 = vand.u32 %v235, 4294901760
        %259 = vmatpush.msra.mxu0 %v258
        %v260 = vand.u32 %v234, 4294901760
        %261 = vmatpush.msra.mxu0 %v260
        %v262 = vand.u32 %v233, 4294901760
        %263 = vmatpush.msra.mxu0 %v262
        %v264 = vand.u32 %v232, 4294901760
        %265 = vmatpush.msra.mxu0 %v264
        %v266 = vand.u32 %v231, 4294901760
        %267 = vmatpush.msra.mxu0 %v266
        %v268 = vand.u32 %v230, 4294901760
        %269 = vmatpush.msra.mxu0 %v268
        %v270 = vand.u32 %v229, 4294901760
        %271 = vmatpush.msra.mxu0 %v270
        %v272 = vand.u32 %v228, 4294901760
        %273 = vmatpush.msra.mxu0 %v272
        %v274 = vand.u32 %v227, 4294901760
        %275 = vmatpush.msra.mxu0 %v274
        %v276 = vand.u32 %v226, 4294901760
        %277 = vmatpush.msra.mxu0 %v276
        %v278 = vand.u32 %v210, 4294901760
        %v279 = vsub.f32 %v210, %v278
        %v280 = vand.u32 %v279, 4294901760
        %v281 = vsub.f32 %v279, %v280
        %v282 = vand.u32 %v281, 4294901760
        %283 = vmatmul.f32.gmra.mxu0 %v282
        %v284 = vpop.f32.mrf.mxu0
        %v285 = vadd.f32 %v244, %v284
        %v286 = vand.u32 %v211, 4294901760
        %v287 = vsub.f32 %v211, %v286
        %v288 = vand.u32 %v287, 4294901760
        %v289 = vsub.f32 %v287, %v288
        %v290 = vand.u32 %v289, 4294901760
        %291 = vmatmul.f32.gmra.mxu0 %v290
        %v292 = vpop.f32.mrf.mxu0
        %v293 = vadd.f32 %v244, %v292
        %v294 = vand.u32 %v212, 4294901760
        %v295 = vsub.f32 %v212, %v294
        %v296 = vand.u32 %v295, 4294901760
        %v297 = vsub.f32 %v295, %v296
        %v298 = vand.u32 %v297, 4294901760
        %299 = vmatmul.f32.gmra.mxu0 %v298
        %v300 = vpop.f32.mrf.mxu0
        %v301 = vadd.f32 %v244, %v300
        %v302 = vand.u32 %v213, 4294901760
        %v303 = vsub.f32 %v213, %v302
        %v304 = vand.u32 %v303, 4294901760
        %v305 = vsub.f32 %v303, %v304
        %v306 = vand.u32 %v305, 4294901760
        %307 = vmatmul.f32.gmra.mxu0 %v306
        %v308 = vpop.f32.mrf.mxu0
        %v309 = vadd.f32 %v244, %v308
        %v310 = vand.u32 %v214, 4294901760
        %v311 = vsub.f32 %v214, %v310
        %v312 = vand.u32 %v311, 4294901760
        %v313 = vsub.f32 %v311, %v312
        %v314 = vand.u32 %v313, 4294901760
        %315 = vmatmul.f32.gmra.mxu0 %v314
        %v316 = vpop.f32.mrf.mxu0
        %v317 = vadd.f32 %v244, %v316
        %v318 = vand.u32 %v215, 4294901760
        %v319 = vsub.f32 %v215, %v318
        %v320 = vand.u32 %v319, 4294901760
        %v321 = vsub.f32 %v319, %v320
        %v322 = vand.u32 %v321, 4294901760
        %323 = vmatmul.f32.gmra.mxu0 %v322
        %v324 = vpop.f32.mrf.mxu0
        %v325 = vadd.f32 %v244, %v324
        %v326 = vand.u32 %v216, 4294901760
        %v327 = vsub.f32 %v216, %v326
        %v328 = vand.u32 %v327, 4294901760
        %v329 = vsub.f32 %v327, %v328
        %v330 = vand.u32 %v329, 4294901760
        %331 = vmatmul.f32.gmra.mxu0 %v330
        %v332 = vpop.f32.mrf.mxu0
        %v333 = vadd.f32 %v244, %v332
        %v334 = vand.u32 %v217, 4294901760
        %v335 = vsub.f32 %v217, %v334
        %v336 = vand.u32 %v335, 4294901760
        %v337 = vsub.f32 %v335, %v336
        %v338 = vand.u32 %v337, 4294901760
        %339 = vmatmul.f32.gmra.mxu0 %v338
        %v340 = vpop.f32.mrf.mxu0
        %v341 = vadd.f32 %v244, %v340
        %v342 = vand.u32 %v218, 4294901760
        %v343 = vsub.f32 %v218, %v342
        %v344 = vand.u32 %v343, 4294901760
        %v345 = vsub.f32 %v343, %v344
        %v346 = vand.u32 %v345, 4294901760
        %347 = vmatmul.f32.gmra.mxu0 %v346
        %v348 = vpop.f32.mrf.mxu0
        %v349 = vadd.f32 %v244, %v348
        %v350 = vand.u32 %v219, 4294901760
        %v351 = vsub.f32 %v219, %v350
        %v352 = vand.u32 %v351, 4294901760
        %v353 = vsub.f32 %v351, %v352
        %v354 = vand.u32 %v353, 4294901760
        %355 = vmatmul.f32.gmra.mxu0 %v354
        %v356 = vpop.f32.mrf.mxu0
        %v357 = vadd.f32 %v244, %v356
        %v358 = vand.u32 %v220, 4294901760
        %v359 = vsub.f32 %v220, %v358
        %v360 = vand.u32 %v359, 4294901760
        %v361 = vsub.f32 %v359, %v360
        %v362 = vand.u32 %v361, 4294901760
        %363 = vmatmul.f32.gmra.mxu0 %v362
        %v364 = vpop.f32.mrf.mxu0
        %v365 = vadd.f32 %v244, %v364
        %v366 = vand.u32 %v221, 4294901760
        %v367 = vsub.f32 %v221, %v366
        %v368 = vand.u32 %v367, 4294901760
        %v369 = vsub.f32 %v367, %v368
        %v370 = vand.u32 %v369, 4294901760
        %371 = vmatmul.f32.gmra.mxu0 %v370
        %v372 = vpop.f32.mrf.mxu0
        %v373 = vadd.f32 %v244, %v372
        %v374 = vand.u32 %v222, 4294901760
        %v375 = vsub.f32 %v222, %v374
        %v376 = vand.u32 %v375, 4294901760
        %v377 = vsub.f32 %v375, %v376
        %v378 = vand.u32 %v377, 4294901760
        %379 = vmatmul.f32.gmra.mxu0 %v378
        %v380 = vpop.f32.mrf.mxu0
        %v381 = vadd.f32 %v244, %v380
        %v382 = vand.u32 %v223, 4294901760
        %v383 = vsub.f32 %v223, %v382
        %v384 = vand.u32 %v383, 4294901760
        %v385 = vsub.f32 %v383, %v384
        %v386 = vand.u32 %v385, 4294901760
        %387 = vmatmul.f32.gmra.mxu0 %v386
        %v388 = vpop.f32.mrf.mxu0
        %v389 = vadd.f32 %v244, %v388
        %v390 = vand.u32 %v224, 4294901760
        %v391 = vsub.f32 %v224, %v390
        %v392 = vand.u32 %v391, 4294901760
        %v393 = vsub.f32 %v391, %v392
        %v394 = vand.u32 %v393, 4294901760
        %395 = vmatmul.f32.gmra.mxu0 %v394
        %v396 = vpop.f32.mrf.mxu0
        %v397 = vadd.f32 %v244, %v396
        %v398 = vand.u32 %v225, 4294901760
        %v399 = vsub.f32 %v225, %v398
        %v400 = vand.u32 %v399, 4294901760
        %v401 = vsub.f32 %v399, %v400
        %v402 = vand.u32 %v401, 4294901760
        %403 = vmatmul.f32.gmra.mxu0 %v402
        %v404 = vpop.f32.mrf.mxu0
        %v405 = vadd.f32 %v244, %v404
        %406 = vdwg.mxu0
        %v407 = vand.u32 %v241, 4294901760
        %v408 = vsub.f32 %v241, %v407
        %v409 = vand.u32 %v408, 4294901760
        %v410 = vsub.f32 %v408, %v409
        %v411 = vand.u32 %v410, 4294901760
        %412 = vmatpush.msra.mxu0 %v411
        %v413 = vand.u32 %v240, 4294901760
        %v414 = vsub.f32 %v240, %v413
        %v415 = vand.u32 %v414, 4294901760
        %v416 = vsub.f32 %v414, %v415
        %v417 = vand.u32 %v416, 4294901760
        %418 = vmatpush.msra.mxu0 %v417
        %v419 = vand.u32 %v239, 4294901760
        %v420 = vsub.f32 %v239, %v419
        %v421 = vand.u32 %v420, 4294901760
        %v422 = vsub.f32 %v420, %v421
        %v423 = vand.u32 %v422, 4294901760
        %424 = vmatpush.msra.mxu0 %v423
        %v425 = vand.u32 %v238, 4294901760
        %v426 = vsub.f32 %v238, %v425
        %v427 = vand.u32 %v426, 4294901760
        %v428 = vsub.f32 %v426, %v427
        %v429 = vand.u32 %v428, 4294901760
        %430 = vmatpush.msra.mxu0 %v429
        %v431 = vand.u32 %v237, 4294901760
        %v432 = vsub.f32 %v237, %v431
        %v433 = vand.u32 %v432, 4294901760
        %v434 = vsub.f32 %v432, %v433
        %v435 = vand.u32 %v434, 4294901760
        %436 = vmatpush.msra.mxu0 %v435
        %v437 = vand.u32 %v236, 4294901760
        %v438 = vsub.f32 %v236, %v437
        %v439 = vand.u32 %v438, 4294901760
        %v440 = vsub.f32 %v438, %v439
        %v441 = vand.u32 %v440, 4294901760
        %442 = vmatpush.msra.mxu0 %v441
        %v443 = vand.u32 %v235, 4294901760
        %v444 = vsub.f32 %v235, %v443
        %v445 = vand.u32 %v444, 4294901760
        %v446 = vsub.f32 %v444, %v445
        %v447 = vand.u32 %v446, 4294901760
        %448 = vmatpush.msra.mxu0 %v447
        %v449 = vand.u32 %v234, 4294901760
        %v450 = vsub.f32 %v234, %v449
        %v451 = vand.u32 %v450, 4294901760
        %v452 = vsub.f32 %v450, %v451
        %v453 = vand.u32 %v452, 4294901760
        %454 = vmatpush.msra.mxu0 %v453
        %v455 = vand.u32 %v233, 4294901760
        %v456 = vsub.f32 %v233, %v455
        %v457 = vand.u32 %v456, 4294901760
        %v458 = vsub.f32 %v456, %v457
        %v459 = vand.u32 %v458, 4294901760
        %460 = vmatpush.msra.mxu0 %v459
        %v461 = vand.u32 %v232, 4294901760
        %v462 = vsub.f32 %v232, %v461
        %v463 = vand.u32 %v462, 4294901760
        %v464 = vsub.f32 %v462, %v463
        %v465 = vand.u32 %v464, 4294901760
        %466 = vmatpush.msra.mxu0 %v465
        %v467 = vand.u32 %v231, 4294901760
        %v468 = vsub.f32 %v231, %v467
        %v469 = vand.u32 %v468, 4294901760
        %v470 = vsub.f32 %v468, %v469
        %v471 = vand.u32 %v470, 4294901760
        %472 = vmatpush.msra.mxu0 %v471
        %v473 = vand.u32 %v230, 4294901760
        %v474 = vsub.f32 %v230, %v473
        %v475 = vand.u32 %v474, 4294901760
        %v476 = vsub.f32 %v474, %v475
        %v477 = vand.u32 %v476, 4294901760
        %478 = vmatpush.msra.mxu0 %v477
        %v479 = vand.u32 %v229, 4294901760
        %v480 = vsub.f32 %v229, %v479
        %v481 = vand.u32 %v480, 4294901760
        %v482 = vsub.f32 %v480, %v481
        %v483 = vand.u32 %v482, 4294901760
        %484 = vmatpush.msra.mxu0 %v483
        %v485 = vand.u32 %v228, 4294901760
        %v486 = vsub.f32 %v228, %v485
        %v487 = vand.u32 %v486, 4294901760
        %v488 = vsub.f32 %v486, %v487
        %v489 = vand.u32 %v488, 4294901760
        %490 = vmatpush.msra.mxu0 %v489
        %v491 = vand.u32 %v227, 4294901760
        %v492 = vsub.f32 %v227, %v491
        %v493 = vand.u32 %v492, 4294901760
        %v494 = vsub.f32 %v492, %v493
        %v495 = vand.u32 %v494, 4294901760
        %496 = vmatpush.msra.mxu0 %v495
        %v497 = vand.u32 %v226, 4294901760
        %v498 = vsub.f32 %v226, %v497
        %v499 = vand.u32 %v498, 4294901760
        %v500 = vsub.f32 %v498, %v499
        %v501 = vand.u32 %v500, 4294901760
        %502 = vmatpush.msra.mxu0 %v501
        %v503 = vand.u32 %v210, 4294901760
        %504 = vmatmul.f32.gmra.mxu0 %v503
        %v505 = vpop.f32.mrf.mxu0
        %v506 = vadd.f32 %v285, %v505
        %v507 = vand.u32 %v211, 4294901760
        %508 = vmatmul.f32.gmra.mxu0 %v507
        %v509 = vpop.f32.mrf.mxu0
        %v510 = vadd.f32 %v293, %v509
        %v511 = vand.u32 %v212, 4294901760
        %512 = vmatmul.f32.gmra.mxu0 %v511
        %v513 = vpop.f32.mrf.mxu0
        %v514 = vadd.f32 %v301, %v513
        %v515 = vand.u32 %v213, 4294901760
        %516 = vmatmul.f32.gmra.mxu0 %v515
        %v517 = vpop.f32.mrf.mxu0
        %v518 = vadd.f32 %v309, %v517
        %v519 = vand.u32 %v214, 4294901760
        %520 = vmatmul.f32.gmra.mxu0 %v519
        %v521 = vpop.f32.mrf.mxu0
        %v522 = vadd.f32 %v317, %v521
        %v523 = vand.u32 %v215, 4294901760
        %524 = vmatmul.f32.gmra.mxu0 %v523
        %v525 = vpop.f32.mrf.mxu0
        %v526 = vadd.f32 %v325, %v525
        %v527 = vand.u32 %v216, 4294901760
        %528 = vmatmul.f32.gmra.mxu0 %v527
        %v529 = vpop.f32.mrf.mxu0
        %v530 = vadd.f32 %v333, %v529
        %v531 = vand.u32 %v217, 4294901760
        %532 = vmatmul.f32.gmra.mxu0 %v531
        %v533 = vpop.f32.mrf.mxu0
        %v534 = vadd.f32 %v341, %v533
        %v535 = vand.u32 %v218, 4294901760
        %536 = vmatmul.f32.gmra.mxu0 %v535
        %v537 = vpop.f32.mrf.mxu0
        %v538 = vadd.f32 %v349, %v537
        %v539 = vand.u32 %v219, 4294901760
        %540 = vmatmul.f32.gmra.mxu0 %v539
        %v541 = vpop.f32.mrf.mxu0
        %v542 = vadd.f32 %v357, %v541
        %v543 = vand.u32 %v220, 4294901760
        %544 = vmatmul.f32.gmra.mxu0 %v543
        %v545 = vpop.f32.mrf.mxu0
        %v546 = vadd.f32 %v365, %v545
        %v547 = vand.u32 %v221, 4294901760
        %548 = vmatmul.f32.gmra.mxu0 %v547
        %v549 = vpop.f32.mrf.mxu0
        %v550 = vadd.f32 %v373, %v549
        %v551 = vand.u32 %v222, 4294901760
        %552 = vmatmul.f32.gmra.mxu0 %v551
        %v553 = vpop.f32.mrf.mxu0
        %v554 = vadd.f32 %v381, %v553
        %v555 = vand.u32 %v223, 4294901760
        %556 = vmatmul.f32.gmra.mxu0 %v555
        %v557 = vpop.f32.mrf.mxu0
        %v558 = vadd.f32 %v389, %v557
        %v559 = vand.u32 %v224, 4294901760
        %560 = vmatmul.f32.gmra.mxu0 %v559
        %v561 = vpop.f32.mrf.mxu0
        %v562 = vadd.f32 %v397, %v561
        %v563 = vand.u32 %v225, 4294901760
        %564 = vmatmul.f32.gmra.mxu0 %v563
        %v565 = vpop.f32.mrf.mxu0
        %v566 = vadd.f32 %v405, %v565
        %567 = vdwg.mxu0
        %v568 = vand.u32 %v241, 4294901760
        %v569 = vsub.f32 %v241, %v568
        %570 = vmatpush.msra.mxu0 %v569
        %v571 = vand.u32 %v240, 4294901760
        %v572 = vsub.f32 %v240, %v571
        %573 = vmatpush.msra.mxu0 %v572
        %v574 = vand.u32 %v239, 4294901760
        %v575 = vsub.f32 %v239, %v574
        %576 = vmatpush.msra.mxu0 %v575
        %v577 = vand.u32 %v238, 4294901760
        %v578 = vsub.f32 %v238, %v577
        %579 = vmatpush.msra.mxu0 %v578
        %v580 = vand.u32 %v237, 4294901760
        %v581 = vsub.f32 %v237, %v580
        %582 = vmatpush.msra.mxu0 %v581
        %v583 = vand.u32 %v236, 4294901760
        %v584 = vsub.f32 %v236, %v583
        %585 = vmatpush.msra.mxu0 %v584
        %v586 = vand.u32 %v235, 4294901760
        %v587 = vsub.f32 %v235, %v586
        %588 = vmatpush.msra.mxu0 %v587
        %v589 = vand.u32 %v234, 4294901760
        %v590 = vsub.f32 %v234, %v589
        %591 = vmatpush.msra.mxu0 %v590
        %v592 = vand.u32 %v233, 4294901760
        %v593 = vsub.f32 %v233, %v592
        %594 = vmatpush.msra.mxu0 %v593
        %v595 = vand.u32 %v232, 4294901760
        %v596 = vsub.f32 %v232, %v595
        %597 = vmatpush.msra.mxu0 %v596
        %v598 = vand.u32 %v231, 4294901760
        %v599 = vsub.f32 %v231, %v598
        %600 = vmatpush.msra.mxu0 %v599
        %v601 = vand.u32 %v230, 4294901760
        %v602 = vsub.f32 %v230, %v601
        %603 = vmatpush.msra.mxu0 %v602
        %v604 = vand.u32 %v229, 4294901760
        %v605 = vsub.f32 %v229, %v604
        %606 = vmatpush.msra.mxu0 %v605
        %v607 = vand.u32 %v228, 4294901760
        %v608 = vsub.f32 %v228, %v607
        %609 = vmatpush.msra.mxu0 %v608
        %v610 = vand.u32 %v227, 4294901760
        %v611 = vsub.f32 %v227, %v610
        %612 = vmatpush.msra.mxu0 %v611
        %v613 = vand.u32 %v226, 4294901760
        %v614 = vsub.f32 %v226, %v613
        %615 = vmatpush.msra.mxu0 %v614
        %v616 = vand.u32 %v210, 4294901760
        %v617 = vsub.f32 %v210, %v616
        %618 = vmatmul.f32.gmra.mxu0 %v617
        %v619 = vpop.f32.mrf.mxu0
        %v620 = vadd.f32 %v506, %v619
        %v621 = vand.u32 %v211, 4294901760
        %v622 = vsub.f32 %v211, %v621
        %623 = vmatmul.f32.gmra.mxu0 %v622
        %v624 = vpop.f32.mrf.mxu0
        %v625 = vadd.f32 %v510, %v624
        %v626 = vand.u32 %v212, 4294901760
        %v627 = vsub.f32 %v212, %v626
        %628 = vmatmul.f32.gmra.mxu0 %v627
        %v629 = vpop.f32.mrf.mxu0
        %v630 = vadd.f32 %v514, %v629
        %v631 = vand.u32 %v213, 4294901760
        %v632 = vsub.f32 %v213, %v631
        %633 = vmatmul.f32.gmra.mxu0 %v632
        %v634 = vpop.f32.mrf.mxu0
        %v635 = vadd.f32 %v518, %v634
        %v636 = vand.u32 %v214, 4294901760
        %v637 = vsub.f32 %v214, %v636
        %638 = vmatmul.f32.gmra.mxu0 %v637
        %v639 = vpop.f32.mrf.mxu0
        %v640 = vadd.f32 %v522, %v639
        %v641 = vand.u32 %v215, 4294901760
        %v642 = vsub.f32 %v215, %v641
        %643 = vmatmul.f32.gmra.mxu0 %v642
        %v644 = vpop.f32.mrf.mxu0
        %v645 = vadd.f32 %v526, %v644
        %v646 = vand.u32 %v216, 4294901760
        %v647 = vsub.f32 %v216, %v646
        %648 = vmatmul.f32.gmra.mxu0 %v647
        %v649 = vpop.f32.mrf.mxu0
        %v650 = vadd.f32 %v530, %v649
        %v651 = vand.u32 %v217, 4294901760
        %v652 = vsub.f32 %v217, %v651
        %653 = vmatmul.f32.gmra.mxu0 %v652
        %v654 = vpop.f32.mrf.mxu0
        %v655 = vadd.f32 %v534, %v654
        %v656 = vand.u32 %v218, 4294901760
        %v657 = vsub.f32 %v218, %v656
        %658 = vmatmul.f32.gmra.mxu0 %v657
        %v659 = vpop.f32.mrf.mxu0
        %v660 = vadd.f32 %v538, %v659
        %v661 = vand.u32 %v219, 4294901760
        %v662 = vsub.f32 %v219, %v661
        %663 = vmatmul.f32.gmra.mxu0 %v662
        %v664 = vpop.f32.mrf.mxu0
        %v665 = vadd.f32 %v542, %v664
        %v666 = vand.u32 %v220, 4294901760
        %v667 = vsub.f32 %v220, %v666
        %668 = vmatmul.f32.gmra.mxu0 %v667
        %v669 = vpop.f32.mrf.mxu0
        %v670 = vadd.f32 %v546, %v669
        %v671 = vand.u32 %v221, 4294901760
        %v672 = vsub.f32 %v221, %v671
        %673 = vmatmul.f32.gmra.mxu0 %v672
        %v674 = vpop.f32.mrf.mxu0
        %v675 = vadd.f32 %v550, %v674
        %v676 = vand.u32 %v222, 4294901760
        %v677 = vsub.f32 %v222, %v676
        %678 = vmatmul.f32.gmra.mxu0 %v677
        %v679 = vpop.f32.mrf.mxu0
        %v680 = vadd.f32 %v554, %v679
        %v681 = vand.u32 %v223, 4294901760
        %v682 = vsub.f32 %v223, %v681
        %683 = vmatmul.f32.gmra.mxu0 %v682
        %v684 = vpop.f32.mrf.mxu0
        %v685 = vadd.f32 %v558, %v684
        %v686 = vand.u32 %v224, 4294901760
        %v687 = vsub.f32 %v224, %v686
        %688 = vmatmul.f32.gmra.mxu0 %v687
        %v689 = vpop.f32.mrf.mxu0
        %v690 = vadd.f32 %v562, %v689
        %v691 = vand.u32 %v225, 4294901760
        %v692 = vsub.f32 %v225, %v691
        %693 = vmatmul.f32.gmra.mxu0 %v692
        %v694 = vpop.f32.mrf.mxu0
        %v695 = vadd.f32 %v566, %v694
        %696 = vdwg.mxu0
        %v697 = vand.u32 %v241, 4294901760
        %698 = vmatpush.msra.mxu0 %v697
        %v699 = vand.u32 %v240, 4294901760
        %700 = vmatpush.msra.mxu0 %v699
        %v701 = vand.u32 %v239, 4294901760
        %702 = vmatpush.msra.mxu0 %v701
        %v703 = vand.u32 %v238, 4294901760
        %704 = vmatpush.msra.mxu0 %v703
        %v705 = vand.u32 %v237, 4294901760
        %706 = vmatpush.msra.mxu0 %v705
        %v707 = vand.u32 %v236, 4294901760
        %708 = vmatpush.msra.mxu0 %v707
        %v709 = vand.u32 %v235, 4294901760
        %710 = vmatpush.msra.mxu0 %v709
        %v711 = vand.u32 %v234, 4294901760
        %712 = vmatpush.msra.mxu0 %v711
        %v713 = vand.u32 %v233, 4294901760
        %714 = vmatpush.msra.mxu0 %v713
        %v715 = vand.u32 %v232, 4294901760
        %716 = vmatpush.msra.mxu0 %v715
        %v717 = vand.u32 %v231, 4294901760
        %718 = vmatpush.msra.mxu0 %v717
        %v719 = vand.u32 %v230, 4294901760
        %720 = vmatpush.msra.mxu0 %v719
        %v721 = vand.u32 %v229, 4294901760
        %722 = vmatpush.msra.mxu0 %v721
        %v723 = vand.u32 %v228, 4294901760
        %724 = vmatpush.msra.mxu0 %v723
        %v725 = vand.u32 %v227, 4294901760
        %726 = vmatpush.msra.mxu0 %v725
        %v727 = vand.u32 %v226, 4294901760
        %728 = vmatpush.msra.mxu0 %v727
        %v729 = vand.u32 %v210, 4294901760
        %v730 = vsub.f32 %v210, %v729
        %v731 = vand.u32 %v730, 4294901760
        %732 = vmatmul.f32.gmra.mxu0 %v731
        %v733 = vpop.f32.mrf.mxu0
        %v734 = vadd.f32 %v620, %v733
        %v735 = vand.u32 %v211, 4294901760
        %v736 = vsub.f32 %v211, %v735
        %v737 = vand.u32 %v736, 4294901760
        %738 = vmatmul.f32.gmra.mxu0 %v737
        %v739 = vpop.f32.mrf.mxu0
        %v740 = vadd.f32 %v625, %v739
        %v741 = vand.u32 %v212, 4294901760
        %v742 = vsub.f32 %v212, %v741
        %v743 = vand.u32 %v742, 4294901760
        %744 = vmatmul.f32.gmra.mxu0 %v743
        %v745 = vpop.f32.mrf.mxu0
        %v746 = vadd.f32 %v630, %v745
        %v747 = vand.u32 %v213, 4294901760
        %v748 = vsub.f32 %v213, %v747
        %v749 = vand.u32 %v748, 4294901760
        %750 = vmatmul.f32.gmra.mxu0 %v749
        %v751 = vpop.f32.mrf.mxu0
        %v752 = vadd.f32 %v635, %v751
        %v753 = vand.u32 %v214, 4294901760
        %v754 = vsub.f32 %v214, %v753
        %v755 = vand.u32 %v754, 4294901760
        %756 = vmatmul.f32.gmra.mxu0 %v755
        %v757 = vpop.f32.mrf.mxu0
        %v758 = vadd.f32 %v640, %v757
        %v759 = vand.u32 %v215, 4294901760
        %v760 = vsub.f32 %v215, %v759
        %v761 = vand.u32 %v760, 4294901760
        %762 = vmatmul.f32.gmra.mxu0 %v761
        %v763 = vpop.f32.mrf.mxu0
        %v764 = vadd.f32 %v645, %v763
        %v765 = vand.u32 %v216, 4294901760
        %v766 = vsub.f32 %v216, %v765
        %v767 = vand.u32 %v766, 4294901760
        %768 = vmatmul.f32.gmra.mxu0 %v767
        %v769 = vpop.f32.mrf.mxu0
        %v770 = vadd.f32 %v650, %v769
        %v771 = vand.u32 %v217, 4294901760
        %v772 = vsub.f32 %v217, %v771
        %v773 = vand.u32 %v772, 4294901760
        %774 = vmatmul.f32.gmra.mxu0 %v773
        %v775 = vpop.f32.mrf.mxu0
        %v776 = vadd.f32 %v655, %v775
        %v777 = vand.u32 %v218, 4294901760
        %v778 = vsub.f32 %v218, %v777
        %v779 = vand.u32 %v778, 4294901760
        %780 = vmatmul.f32.gmra.mxu0 %v779
        %v781 = vpop.f32.mrf.mxu0
        %v782 = vadd.f32 %v660, %v781
        %v783 = vand.u32 %v219, 4294901760
        %v784 = vsub.f32 %v219, %v783
        %v785 = vand.u32 %v784, 4294901760
        %786 = vmatmul.f32.gmra.mxu0 %v785
        %v787 = vpop.f32.mrf.mxu0
        %v788 = vadd.f32 %v665, %v787
        %v789 = vand.u32 %v220, 4294901760
        %v790 = vsub.f32 %v220, %v789
        %v791 = vand.u32 %v790, 4294901760
        %792 = vmatmul.f32.gmra.mxu0 %v791
        %v793 = vpop.f32.mrf.mxu0
        %v794 = vadd.f32 %v670, %v793
        %v795 = vand.u32 %v221, 4294901760
        %v796 = vsub.f32 %v221, %v795
        %v797 = vand.u32 %v796, 4294901760
        %798 = vmatmul.f32.gmra.mxu0 %v797
        %v799 = vpop.f32.mrf.mxu0
        %v800 = vadd.f32 %v675, %v799
        %v801 = vand.u32 %v222, 4294901760
        %v802 = vsub.f32 %v222, %v801
        %v803 = vand.u32 %v802, 4294901760
        %804 = vmatmul.f32.gmra.mxu0 %v803
        %v805 = vpop.f32.mrf.mxu0
        %v806 = vadd.f32 %v680, %v805
        %v807 = vand.u32 %v223, 4294901760
        %v808 = vsub.f32 %v223, %v807
        %v809 = vand.u32 %v808, 4294901760
        %810 = vmatmul.f32.gmra.mxu0 %v809
        %v811 = vpop.f32.mrf.mxu0
        %v812 = vadd.f32 %v685, %v811
        %v813 = vand.u32 %v224, 4294901760
        %v814 = vsub.f32 %v224, %v813
        %v815 = vand.u32 %v814, 4294901760
        %816 = vmatmul.f32.gmra.mxu0 %v815
        %v817 = vpop.f32.mrf.mxu0
        %v818 = vadd.f32 %v690, %v817
        %v819 = vand.u32 %v225, 4294901760
        %v820 = vsub.f32 %v225, %v819
        %v821 = vand.u32 %v820, 4294901760
        %822 = vmatmul.f32.gmra.mxu0 %v821
        %v823 = vpop.f32.mrf.mxu0
        %v824 = vadd.f32 %v695, %v823
        %825 = vdwg.mxu0
        %v826 = vand.u32 %v241, 4294901760
        %v827 = vsub.f32 %v241, %v826
        %v828 = vand.u32 %v827, 4294901760
        %829 = vmatpush.msra.mxu0 %v828
        %v830 = vand.u32 %v240, 4294901760
        %v831 = vsub.f32 %v240, %v830
        %v832 = vand.u32 %v831, 4294901760
        %833 = vmatpush.msra.mxu0 %v832
        %v834 = vand.u32 %v239, 4294901760
        %v835 = vsub.f32 %v239, %v834
        %v836 = vand.u32 %v835, 4294901760
        %837 = vmatpush.msra.mxu0 %v836
        %v838 = vand.u32 %v238, 4294901760
        %v839 = vsub.f32 %v238, %v838
        %v840 = vand.u32 %v839, 4294901760
        %841 = vmatpush.msra.mxu0 %v840
        %v842 = vand.u32 %v237, 4294901760
        %v843 = vsub.f32 %v237, %v842
        %v844 = vand.u32 %v843, 4294901760
        %845 = vmatpush.msra.mxu0 %v844
        %v846 = vand.u32 %v236, 4294901760
        %v847 = vsub.f32 %v236, %v846
        %v848 = vand.u32 %v847, 4294901760
        %849 = vmatpush.msra.mxu0 %v848
        %v850 = vand.u32 %v235, 4294901760
        %v851 = vsub.f32 %v235, %v850
        %v852 = vand.u32 %v851, 4294901760
        %853 = vmatpush.msra.mxu0 %v852
        %v854 = vand.u32 %v234, 4294901760
        %v855 = vsub.f32 %v234, %v854
        %v856 = vand.u32 %v855, 4294901760
        %857 = vmatpush.msra.mxu0 %v856
        %v858 = vand.u32 %v233, 4294901760
        %v859 = vsub.f32 %v233, %v858
        %v860 = vand.u32 %v859, 4294901760
        %861 = vmatpush.msra.mxu0 %v860
        %v862 = vand.u32 %v232, 4294901760
        %v863 = vsub.f32 %v232, %v862
        %v864 = vand.u32 %v863, 4294901760
        %865 = vmatpush.msra.mxu0 %v864
        %v866 = vand.u32 %v231, 4294901760
        %v867 = vsub.f32 %v231, %v866
        %v868 = vand.u32 %v867, 4294901760
        %869 = vmatpush.msra.mxu0 %v868
        %v870 = vand.u32 %v230, 4294901760
        %v871 = vsub.f32 %v230, %v870
        %v872 = vand.u32 %v871, 4294901760
        %873 = vmatpush.msra.mxu0 %v872
        %v874 = vand.u32 %v229, 4294901760
        %v875 = vsub.f32 %v229, %v874
        %v876 = vand.u32 %v875, 4294901760
        %877 = vmatpush.msra.mxu0 %v876
        %v878 = vand.u32 %v228, 4294901760
        %v879 = vsub.f32 %v228, %v878
        %v880 = vand.u32 %v879, 4294901760
        %881 = vmatpush.msra.mxu0 %v880
        %v882 = vand.u32 %v227, 4294901760
        %v883 = vsub.f32 %v227, %v882
        %v884 = vand.u32 %v883, 4294901760
        %885 = vmatpush.msra.mxu0 %v884
        %v886 = vand.u32 %v226, 4294901760
        %v887 = vsub.f32 %v226, %v886
        %v888 = vand.u32 %v887, 4294901760
        %889 = vmatpush.msra.mxu0 %v888
        %v890 = vand.u32 %v210, 4294901760
        %891 = vmatmul.f32.gmra.mxu0 %v890
        %v892 = vpop.f32.mrf.mxu0
        %v893 = vadd.f32 %v734, %v892
        %v894 = vand.u32 %v211, 4294901760
        %895 = vmatmul.f32.gmra.mxu0 %v894
        %v896 = vpop.f32.mrf.mxu0
        %v897 = vadd.f32 %v740, %v896
        %v898 = vand.u32 %v212, 4294901760
        %899 = vmatmul.f32.gmra.mxu0 %v898
        %v900 = vpop.f32.mrf.mxu0
        %v901 = vadd.f32 %v746, %v900
        %v902 = vand.u32 %v213, 4294901760
        %903 = vmatmul.f32.gmra.mxu0 %v902
        %v904 = vpop.f32.mrf.mxu0
        %v905 = vadd.f32 %v752, %v904
        %v906 = vand.u32 %v214, 4294901760
        %907 = vmatmul.f32.gmra.mxu0 %v906
        %v908 = vpop.f32.mrf.mxu0
        %v909 = vadd.f32 %v758, %v908
        %v910 = vand.u32 %v215, 4294901760
        %911 = vmatmul.f32.gmra.mxu0 %v910
        %v912 = vpop.f32.mrf.mxu0
        %v913 = vadd.f32 %v764, %v912
        %v914 = vand.u32 %v216, 4294901760
        %915 = vmatmul.f32.gmra.mxu0 %v914
        %v916 = vpop.f32.mrf.mxu0
        %v917 = vadd.f32 %v770, %v916
        %v918 = vand.u32 %v217, 4294901760
        %919 = vmatmul.f32.gmra.mxu0 %v918
        %v920 = vpop.f32.mrf.mxu0
        %v921 = vadd.f32 %v776, %v920
        %v922 = vand.u32 %v218, 4294901760
        %923 = vmatmul.f32.gmra.mxu0 %v922
        %v924 = vpop.f32.mrf.mxu0
        %v925 = vadd.f32 %v782, %v924
        %v926 = vand.u32 %v219, 4294901760
        %927 = vmatmul.f32.gmra.mxu0 %v926
        %v928 = vpop.f32.mrf.mxu0
        %v929 = vadd.f32 %v788, %v928
        %v930 = vand.u32 %v220, 4294901760
        %931 = vmatmul.f32.gmra.mxu0 %v930
        %v932 = vpop.f32.mrf.mxu0
        %v933 = vadd.f32 %v794, %v932
        %v934 = vand.u32 %v221, 4294901760
        %935 = vmatmul.f32.gmra.mxu0 %v934
        %v936 = vpop.f32.mrf.mxu0
        %v937 = vadd.f32 %v800, %v936
        %v938 = vand.u32 %v222, 4294901760
        %939 = vmatmul.f32.gmra.mxu0 %v938
        %v940 = vpop.f32.mrf.mxu0
        %v941 = vadd.f32 %v806, %v940
        %v942 = vand.u32 %v223, 4294901760
        %943 = vmatmul.f32.gmra.mxu0 %v942
        %v944 = vpop.f32.mrf.mxu0
        %v945 = vadd.f32 %v812, %v944
        %v946 = vand.u32 %v224, 4294901760
        %947 = vmatmul.f32.gmra.mxu0 %v946
        %v948 = vpop.f32.mrf.mxu0
        %v949 = vadd.f32 %v818, %v948
        %v950 = vand.u32 %v225, 4294901760
        %951 = vmatmul.f32.gmra.mxu0 %v950
        %v952 = vpop.f32.mrf.mxu0
        %v953 = vadd.f32 %v824, %v952
        %954 = vdwg.mxu0
        %v955 = vand.u32 %v241, 4294901760
        %956 = vmatpush.msra.mxu0 %v955
        %v957 = vand.u32 %v240, 4294901760
        %958 = vmatpush.msra.mxu0 %v957
        %v959 = vand.u32 %v239, 4294901760
        %960 = vmatpush.msra.mxu0 %v959
        %v961 = vand.u32 %v238, 4294901760
        %962 = vmatpush.msra.mxu0 %v961
        %v963 = vand.u32 %v237, 4294901760
        %964 = vmatpush.msra.mxu0 %v963
        %v965 = vand.u32 %v236, 4294901760
        %966 = vmatpush.msra.mxu0 %v965
        %v967 = vand.u32 %v235, 4294901760
        %968 = vmatpush.msra.mxu0 %v967
        %v969 = vand.u32 %v234, 4294901760
        %970 = vmatpush.msra.mxu0 %v969
        %v971 = vand.u32 %v233, 4294901760
        %972 = vmatpush.msra.mxu0 %v971
        %v973 = vand.u32 %v232, 4294901760
        %974 = vmatpush.msra.mxu0 %v973
        %v975 = vand.u32 %v231, 4294901760
        %976 = vmatpush.msra.mxu0 %v975
        %v977 = vand.u32 %v230, 4294901760
        %978 = vmatpush.msra.mxu0 %v977
        %v979 = vand.u32 %v229, 4294901760
        %980 = vmatpush.msra.mxu0 %v979
        %v981 = vand.u32 %v228, 4294901760
        %982 = vmatpush.msra.mxu0 %v981
        %v983 = vand.u32 %v227, 4294901760
        %984 = vmatpush.msra.mxu0 %v983
        %v985 = vand.u32 %v226, 4294901760
        %986 = vmatpush.msra.mxu0 %v985
        %v987 = vand.u32 %v210, 4294901760
        %988 = vmatmul.f32.gmra.mxu0 %v987
        %v989 = vpop.f32.mrf.mxu0
        %v990 = vadd.f32 %v893, %v989
        %v991 = vand.u32 %v211, 4294901760
        %992 = vmatmul.f32.gmra.mxu0 %v991
        %v993 = vpop.f32.mrf.mxu0
        %v994 = vadd.f32 %v897, %v993
        %v995 = vand.u32 %v212, 4294901760
        %996 = vmatmul.f32.gmra.mxu0 %v995
        %v997 = vpop.f32.mrf.mxu0
        %v998 = vadd.f32 %v901, %v997
        %v999 = vand.u32 %v213, 4294901760
        %1000 = vmatmul.f32.gmra.mxu0 %v999
        %v1001 = vpop.f32.mrf.mxu0
        %v1002 = vadd.f32 %v905, %v1001
        %v1003 = vand.u32 %v214, 4294901760
        %1004 = vmatmul.f32.gmra.mxu0 %v1003
        %v1005 = vpop.f32.mrf.mxu0
        %v1006 = vadd.f32 %v909, %v1005
        %v1007 = vand.u32 %v215, 4294901760
        %1008 = vmatmul.f32.gmra.mxu0 %v1007
        %v1009 = vpop.f32.mrf.mxu0
        %v1010 = vadd.f32 %v913, %v1009
        %v1011 = vand.u32 %v216, 4294901760
        %1012 = vmatmul.f32.gmra.mxu0 %v1011
        %v1013 = vpop.f32.mrf.mxu0
        %v1014 = vadd.f32 %v917, %v1013
        %v1015 = vand.u32 %v217, 4294901760
        %1016 = vmatmul.f32.gmra.mxu0 %v1015
        %v1017 = vpop.f32.mrf.mxu0
        %v1018 = vadd.f32 %v921, %v1017
        %v1019 = vand.u32 %v218, 4294901760
        %1020 = vmatmul.f32.gmra.mxu0 %v1019
        %v1021 = vpop.f32.mrf.mxu0
        %v1022 = vadd.f32 %v925, %v1021
        %v1023 = vand.u32 %v219, 4294901760
        %1024 = vmatmul.f32.gmra.mxu0 %v1023
        %v1025 = vpop.f32.mrf.mxu0
        %v1026 = vadd.f32 %v929, %v1025
        %v1027 = vand.u32 %v220, 4294901760
        %1028 = vmatmul.f32.gmra.mxu0 %v1027
        %v1029 = vpop.f32.mrf.mxu0
        %v1030 = vadd.f32 %v933, %v1029
        %v1031 = vand.u32 %v221, 4294901760
        %1032 = vmatmul.f32.gmra.mxu0 %v1031
        %v1033 = vpop.f32.mrf.mxu0
        %v1034 = vadd.f32 %v937, %v1033
        %v1035 = vand.u32 %v222, 4294901760
        %1036 = vmatmul.f32.gmra.mxu0 %v1035
        %v1037 = vpop.f32.mrf.mxu0
        %v1038 = vadd.f32 %v941, %v1037
        %v1039 = vand.u32 %v223, 4294901760
        %1040 = vmatmul.f32.gmra.mxu0 %v1039
        %v1041 = vpop.f32.mrf.mxu0
        %v1042 = vadd.f32 %v945, %v1041
        %v1043 = vand.u32 %v224, 4294901760
        %1044 = vmatmul.f32.gmra.mxu0 %v1043
        %v1045 = vpop.f32.mrf.mxu0
        %v1046 = vadd.f32 %v949, %v1045
        %v1047 = vand.u32 %v225, 4294901760
        %1048 = vmatmul.f32.gmra.mxu0 %v1047
        %v1049 = vpop.f32.mrf.mxu0
        %v1050 = vadd.f32 %v953, %v1049
        %1051 = vdwg.mxu0
        %1052 = vst [vmem:[%s207] sm:$0xff] %v990
        %1053 = vst [vmem:[%s207 + $0x8] sm:$0xff] %v994
        %1054 = vst [vmem:[%s207 + $0x10] sm:$0xff] %v998
        %1055 = vst [vmem:[%s207 + $0x18] sm:$0xff] %v1002
        %1056 = vst [vmem:[%s207 + $0x20] sm:$0xff] %v1006
        %1057 = vst [vmem:[%s207 + $0x28] sm:$0xff] %v1010
        %1058 = vst [vmem:[%s207 + $0x30] sm:$0xff] %v1014
        %1059 = vst [vmem:[%s207 + $0x38] sm:$0xff] %v1018
        %1060 = vst [vmem:[%s207 + $0x40] sm:$0xff] %v1022
        %1061 = vst [vmem:[%s207 + $0x48] sm:$0xff] %v1026
        %1062 = vst [vmem:[%s207 + $0x50] sm:$0xff] %v1030
        %1063 = vst [vmem:[%s207 + $0x58] sm:$0xff] %v1034
        %1064 = vst [vmem:[%s207 + $0x60] sm:$0xff] %v1038
        %1065 = vst [vmem:[%s207 + $0x68] sm:$0xff] %v1042
        %1066 = vst [vmem:[%s207 + $0x70] sm:$0xff] %v1046
        %1067 = vst [vmem:[%s207 + $0x78] sm:$0xff] %v1050
        %s1068 = sand.u32 %s97, 1
        %s1069 = scalar_lea.sflag [#allocation4], %s1068
        %s1070 = sand.u32 %s97, 1
        %s1071 = smul.addr %s1070, 128
        %s1072 = scalar_lea.vmem [#allocation7], %s1071
        // Predicated region
        $region41: #{tpu_custom_call.1} parent=31 // pred_check
          %p1073 = pneg %p107
        $region42: #{tpu_custom_call.1} parent=31 // pred_check_branch
          %1075 = sbr.rel (%p1073) target = $region44
        $region43: #{tpu_custom_call.1} parent=31 // pred_region
          %s1076 = smul.u32 16, %s21
          %1078 = vsyncadd %s1069, 0
          %s1079 = smul.addr %s1076, 8
          %s1080 = scalar_lea.hbm %s3, %s1079
          %s1081 = sshll.u32 %s1072, 4
          %s1082 = int_to_ptr.vmem [resolvable:$true] %s1081
          %s1083 = sshll.u32 %s1080, 4
          %s1084 = int_to_ptr.hbm [resolvable:$true] %s1083
          %1089 = dma.vmem_to_hbm [thread:$0]  %s1082, 2048, %s1084, %s1069, 128, 128, 8
        $region44: #{tpu_custom_call.1} parent=31 // pred_fallthru
          _
      $region32: #{tpu_custom_call.1} parent=5 // pred_fallthru
        _
      %p1090 = scmp.le.s32.totalorder 2, %s16
      // Predicated region
      $region45: #{tpu_custom_call.1} parent=5 // pred_check
        %p1091 = pneg %p1090
      $region46: #{tpu_custom_call.1} parent=5 // pred_check_branch
        %1093 = sbr.rel (%p1091) target = $region48
      $region47: #{tpu_custom_call.1} parent=5 // pred_region
        %s1094 = ssub.s32 %s16, 2
        // Predicated region
        $region49: #{tpu_custom_call.1} parent=47 // pred_check
          %p1095 = pneg %p113
        $region50: #{tpu_custom_call.1} parent=47 // pred_check_branch
          %1097 = sbr.rel (%p1095) target = $region52
        $region51: #{tpu_custom_call.1} parent=47 // pred_region
          %s1098 = sand.u32 %s98, 1
          %s1099 = scalar_lea.sflag [#allocation4], %s1098
          %s1100 = sand.u32 %s98, 1
          %s1101 = smul.addr %s1100, 128
          %s1102 = scalar_lea.vmem [#allocation7], %s1101
          %1104 = dma.done %s1099, 2048
        $region52: #{tpu_custom_call.1} parent=47 // pred_fallthru
          _
      $region48: #{tpu_custom_call.1} parent=5 // pred_fallthru
        _
    $region6: #{tpu_custom_call.1} parent=1 // loop_footer
      %s20 = sadd.s32 1, %s16
    $region7: #{tpu_custom_call.1} parent=1 // loop_footer_branch
      %15 = sbr.rel target = $region3
    $region8: #{tpu_custom_call.1} parent=1 // loop_exit
      _
    %1105 = vsyncpa [#allocation3], 1
    %s1106 = scalar_lea.sflag [#allocation3], 1
    %1107 = vsyncpa %s1106, 1
    %1108 = vsyncpa [#allocation6], 1
    %1109 = vsyncpa [#allocation4], 1
    %s1110 = scalar_lea.sflag [#allocation4], 1
    %1111 = vsyncpa %s1110, 1

</llo_original>
